<compile_context>
chip_gen: v5e
topology: v5e:2x2
jax: 0.10.0
libtpu: 0.0.40
codegen_flags: <defaults>
</compile_context>

<pallas_src>
import math

import numpy as np

import jax
import jax.numpy as jnp
from jax import lax
from jax.experimental import pallas as pl
from jax.experimental.pallas import tpu as pltpu

_LANES = 128
_SUBLANES = 8


def _round_up(x, m):
    return ((x + m - 1) // m) * m


def _pick_max_block_rows():
    """Per-generation max block rows for a (rows, 128) slab (f32: rows*512 bytes)."""
    try:
        kind = jax.devices()[0].device_kind.lower()
    except Exception:
        return 2048
    if "v6" in kind or "v7" in kind or "7x" in kind:
        return 8192          # 4 MiB f32 / input block: amortizes grid-step overhead
    if "v5" in kind:
        return 4096          # 2 MiB / input block
    return 2048              # conservative default for older / unknown chips


def _num_tensorcores():
    """Best-effort TensorCores-per-chip (v7x == 2); default to 1 when unknown."""
    try:
        dev = jax.devices()[0]
        for name in ("num_cores", "core_count"):
            v = getattr(dev, name, None)
            if isinstance(v, int) and v >= 1:
                return v
    except Exception:
        pass
    try:
        info = pltpu.get_tpu_info()
        for name in ("num_cores", "core_count", "num_tensorcores", "tensor_core_count"):
            v = getattr(info, name, None)
            if isinstance(v, int) and v >= 1:
                return v
    except Exception:
        pass
    return 1


def _to_slab(a, pad_value):
    """Lane-dense (rows, 128) slab view of `a` (layout-preserving ravel/reshape).

    bf16/f32 inputs keep their native dtype (the f32 cast happens in-kernel), so no
    wrapper-side HBM upcast copy is made.  Only when numel % 128 != 0 is a
    (<128-element) tail pad appended, and the pad uses the reduction-neutral value
    so the hot path needs no masking for it.
    """
    if a.dtype != jnp.float32 and a.dtype != jnp.bfloat16:
        a = a.astype(jnp.float32)
    flat = jnp.ravel(a)
    n = flat.shape[0]
    rem = (-n) % _LANES
    if rem:
        # TODO(synk): numel % 128 != 0 still costs one full-tensor concat copy.
        flat = jnp.concatenate([flat, jnp.full((rem,), pad_value, dtype=flat.dtype)])
    return flat.reshape(-1, _LANES)


def _make_reduce_kernel(contrib_fn, n_in, n_out, block_rows, nblk_per_core,
                        total_blocks, valid_rows):
    """Streaming-reduction kernel body.

    contrib_fn(*f32_blocks) -> tuple of n_out (block_rows, 128) contributions.
    Each contribution is folded to an (8,128) partial (pure vreg adds, no cross-lane
    work) and accumulated directly into the resident output block.  Only the single
    ragged last block takes a pl.when-gated masked path.
    """
    last_blk = total_blocks - 1
    ragged_rows = valid_rows - last_blk * block_rows   # valid rows in the last block
    has_ragged = ragged_rows != block_rows

    def _fold(x):
        # (block_rows,128) -> (8,128): elementwise vreg adds only (VPU).
        return x.reshape(-1, _SUBLANES, _LANES).sum(axis=0)

    def kernel(*refs):
        in_refs = refs[:n_in]
        out_refs = refs[n_in:]

        i = pl.program_id(1)

        @pl.when(i == 0)
        def _():
            for o in out_refs:
                o[...] = jnp.zeros_like(o)

        vals = [r[...].astype(jnp.float32) for r in in_refs]
        contribs = contrib_fn(*vals)

        if has_ragged:
            blk = pl.program_id(0) * nblk_per_core + i

            @pl.when(blk == last_blk)          # cold path: single ragged block
            def _():
                ridx = lax.broadcasted_iota(jnp.int32, (block_rows, _LANES), 0)
                mask = ridx < ragged_rows
                for o, cb in zip(out_refs, contribs):
                    o[...] += _fold(jnp.where(mask, cb, 0.0))

            @pl.when(blk != last_blk)          # hot path: no masking at all
            def _():
                for o, cb in zip(out_refs, contribs):
                    o[...] += _fold(cb)
        else:
            for o, cb in zip(out_refs, contribs):
                o[...] += _fold(cb)

    return kernel


def _reduce_call(contrib_fn, arrays, n_out, pad_value=0.0):
    """Stream `arrays` (all same numel) through one fused reduction kernel.

    Returns a tuple of n_out scalar f32 sums of the corresponding contributions.
    """
    numel = int(arrays[0].size)
    assert numel > 0
    assert all(int(a.size) == numel for a in arrays)

    slabs = [_to_slab(a, pad_value) for a in arrays]
    rows = slabs[0].shape[0]

    # Multiple of 16 keeps both f32 (8,128) and bf16 (16,128) tiling happy.
    block_rows = min(_pick_max_block_rows(), _round_up(rows, 16))
    total_blocks = pl.cdiv(rows, block_rows)

    # Split row-blocks across the two TensorCores of a v7x chip.  Require an even
    # block count so there is never a clamped/duplicated block to mask; 1-TC chips
    # (v5e/v6e) keep a single-core grid (no duplicated reads / double epilogue).
    # TODO(synk): on v7x verify "parallel" megacore-shards this axis; if not, switch
    # to pltpu.CORE_PARALLEL / pl.core_map + create_tensorcore_mesh.
    cores = _num_tensorcores()
    n_split = 2 if (cores >= 2 and total_blocks >= 2 and total_blocks % 2 == 0) else 1
    nblk_per_core = total_blocks // n_split

    kernel = _make_reduce_kernel(contrib_fn, len(slabs), n_out, block_rows,
                                 nblk_per_core, total_blocks, rows)

    def in_map(c, i):
        return (c * nblk_per_core + i, 0)

    in_specs = [pl.BlockSpec((block_rows, _LANES), in_map) for _ in slabs]
    out_shapes = tuple(
        jax.ShapeDtypeStruct((_SUBLANES * n_split, _LANES), jnp.float32)
        for _ in range(n_out)
    )
    out_specs = tuple(
        pl.BlockSpec((_SUBLANES, _LANES), lambda c, i: (c, 0))
        for _ in range(n_out)
    )

    # Double-buffered input blocks dominate VMEM; accumulators/outputs are tiny.
    in_bytes = sum(2 * block_rows * _LANES * s.dtype.itemsize for s in slabs)
    vmem_limit = int(min(64 * 1024 * 1024,
                         max(32 * 1024 * 1024, in_bytes + 8 * 1024 * 1024)))

    outs = pl.pallas_call(
        kernel,
        out_shape=out_shapes,
        grid_spec=pltpu.PrefetchScalarGridSpec(
            num_scalar_prefetch=0,
            grid=(n_split, nblk_per_core),
            in_specs=in_specs,
            out_specs=out_specs,
        ),
        compiler_params=pltpu.CompilerParams(
            dimension_semantics=("parallel", "arbitrary"),
            vmem_limit_bytes=vmem_limit,
        ),
    )(*slabs)
    if not isinstance(outs, (list, tuple)):
        outs = (outs,)

    # Each per-core (8,128) tile holds that core's folded partial sum.
    return tuple(jnp.sum(o) for o in outs)


# --------------------------- contribution bodies ---------------------------
def _contrib_image(xh, tg, v1, v2, v3):
    d = xh - tg
    return (d * d, v1 + v2 + v3)


def _contrib_sse(xh, tg):
    d = xh - tg
    return (d * d,)


def _contrib_sum(x):
    return (x,)


def _contrib_log(x):
    return (jnp.log(x),)


# ---------------------------------------------------------------------------
# URDLoss forward (semantics match the PyTorch module)
# ---------------------------------------------------------------------------
def urd_loss(output, target, var_image1, var_image2, var_image3, lmbda=0.01):
    N, C, H, W = target.shape
    num_pixels = N * H * W
    num_elems = int(target.size)

    x_hat = output["x_hat"]

    # bpp_loss = sum_k log(lik_k).sum() / (-log(2) * num_pixels).  The divisor is
    # identical for every tensor, so all (tiny) likelihood tensors are concatenated
    # and reduced with a single fused log-sum kernel (one dispatch total).
    liks = list(output["likelihoods"].values())
    if liks:
        lik_flat = jnp.concatenate([jnp.ravel(l) for l in liks])
        (log_sum,) = _reduce_call(_contrib_log, [lik_flat], 1, pad_value=1.0)
        bpp_loss = log_sum / (-math.log(2.0) * num_pixels)
    else:
        bpp_loss = jnp.float32(0.0)

    same_numel = all(
        int(v.size) == num_elems for v in (var_image1, var_image2, var_image3)
    )
    if same_numel:
        # Single fused pass over all five image-shaped tensors.
        sse, vsum = _reduce_call(
            _contrib_image, [x_hat, target, var_image1, var_image2, var_image3], 2
        )
        var_mean = vsum / jnp.float32(3 * num_elems)
    else:
        (sse,) = _reduce_call(_contrib_sse, [x_hat, target], 1)
        means = []
        for v in (var_image1, var_image2, var_image3):
            (s,) = _reduce_call(_contrib_sum, [v], 1)
            means.append(s / jnp.float32(int(v.size)))
        var_mean = (means[0] + means[1] + means[2]) / 3.0

    mse_loss = sse / jnp.float32(num_elems)

    # additional = exp(-log(2*var_mean))*mse + 1.5*log(var_mean)
    #            = mse / (2*var_mean)       + 1.5*log(var_mean)
    additional_loss = mse_loss / (2.0 * var_mean) + 1.5 * jnp.log(var_mean)

    out = {}
    out["bpp_loss"] = bpp_loss
    out["mse_loss"] = mse_loss
    out["additional_loss"] = additional_loss * 0.01

    scale = lmbda * 255.0 ** 2
    traditional_plain = scale * mse_loss + bpp_loss
    # PyTorch uses the *unscaled* additional_loss inside log().
    # TODO(synk): jnp.log(additional_loss) is NaN for additional_loss <= 0; the
    # forward value still matches the isnan-guarded branch, but a backward pass
    # would need a masked-operand safe log.
    traditional_with_add = (scale + jnp.log(additional_loss)) * mse_loss + bpp_loss
    # PyTorch: `if not torch.isnan(additional_loss)` -> data-dependent select.
    out["traditional_loss"] = jnp.where(
        jnp.isnan(additional_loss), traditional_plain, traditional_with_add
    )
    out["loss"] = out["traditional_loss"]
    return out


# Pure-jnp reference mirroring the PyTorch module (for the sanity check below).
def _reference_urd_loss(output, target, v1, v2, v3, lmbda=0.01):
    N, C, H, W = target.shape
    num_pixels = N * H * W
    bpp = sum(jnp.sum(jnp.log(l)) / (-math.log(2.0) * num_pixels)
              for l in output["likelihoods"].values())
    mse = jnp.mean((output["x_hat"] - target) ** 2)
    var_mean = (jnp.mean(v1) + jnp.mean(v2) + jnp.mean(v3)) / 3.0
    additional = jnp.exp(-jnp.log(2.0 * var_mean)) * mse + 1.5 * jnp.log(var_mean)
    scale = lmbda * 255.0 ** 2
    trad = jnp.where(jnp.isnan(additional),
                     scale * mse + bpp,
                     (scale + jnp.log(additional)) * mse + bpp)
    return {"bpp_loss": bpp, "mse_loss": mse, "additional_loss": additional * 0.01,
            "traditional_loss": trad, "loss": trad}


if __name__ == "__main__":
    key = jax.random.PRNGKey(0)
    k = jax.random.split(key, 7)

    N, C, H, W = 2, 3, 16, 16  # small NCHW image batch
    target = jax.random.uniform(k[0], (N, C, H, W), jnp.float32)
    x_hat = jnp.clip(
        target + 0.05 * jax.random.normal(k[1], (N, C, H, W), jnp.float32), 0.0, 1.0)
    # likelihoods (values in (0, 1]) — two latent scales as in compressai models
    lik_y = jax.random.uniform(k[2], (N, 8, H // 4, W // 4), jnp.float32, 0.05, 1.0)
    lik_z = jax.random.uniform(k[3], (N, 4, H // 8, W // 8), jnp.float32, 0.05, 1.0)
    # variance images (strictly positive; chosen so additional_loss is well-defined)
    v1 = jax.random.uniform(k[4], (N, C, H, W), jnp.float32, 1.5, 2.5)
    v2 = jax.random.uniform(k[5], (N, C, H, W), jnp.float32, 1.5, 2.5)
    v3 = jax.random.uniform(k[6], (N, C, H, W), jnp.float32, 1.5, 2.5)

    output = {"x_hat": x_hat, "likelihoods": {"y": lik_y, "z": lik_z}}

    out = urd_loss(output, target, v1, v2, v3, lmbda=0.01)
    jax.block_until_ready(out["loss"])

    ref = _reference_urd_loss(output, target, v1, v2, v3, lmbda=0.01)
    for name in ("bpp_loss", "mse_loss", "additional_loss", "traditional_loss", "loss"):
        np.testing.assert_allclose(np.asarray(out[name]), np.asarray(ref[name]),
                                   rtol=1e-3, atol=1e-4, err_msg=name)

    print("KERNEL_OK")
</pallas_src>

<mosaic_0001>
module attributes {stable_mosaic.version = 11 : i64} {
  func.func @kernel(%arg0: i32, %arg1: i32, %arg2: memref<16x128xf32, #tpu.memory_space<vmem>>, %arg3: memref<8x128xf32, #tpu.memory_space<vmem>>) attributes {dimension_semantics = [#tpu.dimension_semantics<parallel>, #tpu.dimension_semantics<arbitrary>], iteration_bounds = array<i64: 1, 1>, scalar_prefetch = 0 : i64, scratch_operands = 0 : i64, tpu.core_type = #tpu.core_type<tc>, window_params = [{transform_indices = @transform_0, window_bounds = array<i64: 16, 128>}, {transform_indices = @transform_1, window_bounds = array<i64: 8, 128>}]} {
    %c0_i32 = arith.constant 0 : i32
    %0 = arith.cmpi eq, %arg1, %c0_i32 : i32
    %1 = arith.extui %0 : i1 to i32
    %c0_i32_0 = arith.constant 0 : i32
    %2 = arith.cmpi ne, %1, %c0_i32_0 : i32
    scf.if %2 {
      %cst = arith.constant 0.000000e+00 : f32
      %13 = vector.broadcast %cst : f32 to vector<8x128xf32>
      %c0_6 = arith.constant 0 : index
      %c0_7 = arith.constant 0 : index
      %14 = vector.load %arg3[%c0_6, %c0_7] : memref<8x128xf32, #tpu.memory_space<vmem>>, vector<8x128xf32>
      tpu.vector_store %arg3[%c0_6, %c0_7], %13 {strides = array<i32>} : memref<8x128xf32, #tpu.memory_space<vmem>>, vector<8x128xf32>,
    } else {
    }
    %c0 = arith.constant 0 : index
    %c0_1 = arith.constant 0 : index
    %3 = vector.load %arg2[%c0, %c0_1] : memref<16x128xf32, #tpu.memory_space<vmem>>, vector<16x128xf32>
    %4 = math.log %3 : vector<16x128xf32>
    %c1_i32 = arith.constant 1 : i32
    %5 = arith.muli %arg0, %c1_i32 : i32
    %6 = arith.addi %5, %arg1 : i32
    %c0_i32_2 = arith.constant 0 : i32
    %7 = arith.cmpi eq, %6, %c0_i32_2 : i32
    %8 = arith.extui %7 : i1 to i32
    %c0_i32_3 = arith.constant 0 : i32
    %9 = arith.cmpi ne, %8, %c0_i32_3 : i32
    scf.if %9 {
      %13 = tpu.iota {dimensions = array<i32: 0>} : vector<16x128xi32>
      %c3_i32 = arith.constant 3 : i32
      %14 = vector.broadcast %c3_i32 : i32 to vector<16x128xi32>
      %15 = arith.cmpi slt, %13, %14 : vector<16x128xi32>
      %c0_6 = arith.constant 0 : index
      %c0_7 = arith.constant 0 : index
      %16 = vector.load %arg3[%c0_6, %c0_7] : memref<8x128xf32, #tpu.memory_space<vmem>>, vector<8x128xf32>
      %cst = arith.constant 0.000000e+00 : f32
      %17 = vector.broadcast %cst : f32 to vector<16x128xf32>
      %18 = arith.select %15, %4, %17 : vector<16x128xi1>, vector<16x128xf32>
      %19 = vector.shape_cast %18 : vector<16x128xf32> to vector<2x8x128xf32>
      %cst_8 = arith.constant dense<0.000000e+00> : vector<8x128xf32>
      %20 = vector.multi_reduction <add>, %19, %cst_8 [0] : vector<2x8x128xf32> to vector<8x128xf32>
      %21 = arith.addf %16, %20 : vector<8x128xf32>
      %c0_9 = arith.constant 0 : index
      %c0_10 = arith.constant 0 : index
      %22 = vector.load %arg3[%c0_9, %c0_10] : memref<8x128xf32, #tpu.memory_space<vmem>>, vector<8x128xf32>
      tpu.vector_store %arg3[%c0_9, %c0_10], %21 {strides = array<i32>} : memref<8x128xf32, #tpu.memory_space<vmem>>, vector<8x128xf32>,
    } else {
    }
    %c0_i32_4 = arith.constant 0 : i32
    %10 = arith.cmpi ne, %6, %c0_i32_4 : i32
    %11 = arith.extui %10 : i1 to i32
    %c0_i32_5 = arith.constant 0 : i32
    %12 = arith.cmpi ne, %11, %c0_i32_5 : i32
    scf.if %12 {
      %c0_6 = arith.constant 0 : index
      %c0_7 = arith.constant 0 : index
      %13 = vector.load %arg3[%c0_6, %c0_7] : memref<8x128xf32, #tpu.memory_space<vmem>>, vector<8x128xf32>
      %14 = vector.shape_cast %4 : vector<16x128xf32> to vector<2x8x128xf32>
      %cst = arith.constant dense<0.000000e+00> : vector<8x128xf32>
      %15 = vector.multi_reduction <add>, %14, %cst [0] : vector<2x8x128xf32> to vector<8x128xf32>
      %16 = arith.addf %13, %15 : vector<8x128xf32>
      %c0_8 = arith.constant 0 : index
      %c0_9 = arith.constant 0 : index
      %17 = vector.load %arg3[%c0_8, %c0_9] : memref<8x128xf32, #tpu.memory_space<vmem>>, vector<8x128xf32>
      tpu.vector_store %arg3[%c0_8, %c0_9], %16 {strides = array<i32>} : memref<8x128xf32, #tpu.memory_space<vmem>>, vector<8x128xf32>,
    } else {
    }
    return
  }
  func.func @transform_0(%arg0: i32, %arg1: i32) -> (i32, i32) {
    %c1_i32 = arith.constant 1 : i32
    %0 = arith.muli %arg0, %c1_i32 : i32
    %1 = arith.addi %0, %arg1 : i32
    %c0_i32 = arith.constant 0 : i32
    %c0_i32_0 = arith.constant 0 : i32
    return %1, %c0_i32 : i32, i32
  }
  func.func @transform_1(%arg0: i32, %arg1: i32) -> (i32, i32) {
    %c0_i32 = arith.constant 0 : i32
    %c0_i32_0 = arith.constant 0 : i32
    return %arg0, %c0_i32 : i32, i32
  }
}

</mosaic_0001>

<llo_original>
// kernel: tpu_custom_call.1
$region0: #{tpu_custom_call.1}
  #allocation0 [shape = 'u32[]', space=smem, size = 0x4, offset = 0x4, fixed_abs, tag = 'smem constant byte address 0x4 - core index']
  #allocation1 [shape = 'u32[72,128]{1,0:T(1,128)}', space=vmem, size = 0x9000, scoped, tag = 'internal scratch']
  %s0 = inlined_call_operand.hbm [shape: f32[3,128], index: 0, kind: input, shape index: {}]
  %s1 = inlined_call_operand.hbm [shape: f32[8,128], index: 1, kind: output, shape index: {}]
  %s2 = sld [smem:[#allocation0]]
  $region30: #{tpu_custom_call.1} parent=0
    _
  %s4 = ssub.s32 1, %s2
  %s5 = scalar_select 0, %s4, %s2
  $region1: #{tpu_custom_call.1} parent=0
    #allocation2 [shape = 'u8[8192]{0}', space=vmem, size = 0x2000, scoped, tag = 'input window, operand 0, single buffered']
    #allocation3 [shape = 's32[1]{0}', space=sflag, size = 0x4, scoped, tag = 'scoped memory for tpu_custom_call.1']
    #allocation4 [shape = 's32[1]{0}', space=sflag, size = 0x4, scoped, tag = 'scoped memory for tpu_custom_call.1']
    #allocation5 [shape = 'u8[4096]{0}', space=vmem, size = 0x1000, scoped, tag = 'output window, operand 0, single buffered']
    %6 = vsyncpa [#allocation3], 0
    %7 = vsyncpa [#allocation4], 0
    // Predicated region
    $region2: #{tpu_custom_call.1} parent=1 // pred_check
      _
    $region3: #{tpu_custom_call.1} parent=1 // pred_check_branch
      %9 = sbr.rel (0) target = $region5
    $region4: #{tpu_custom_call.1} parent=1 // pred_region
      %s10 = sadd.s32 0, 0
      %s11 = smul.u32 4, %s10
      %s12 = ssub.s32 1, %s11
      %s13 = smul.u32 4, %s12
      %s14 = ssub.s32 16, %s13
      %s15 = sshll.u32 %s14, 4
      %16 = vsyncadd [#allocation3], %s15
      %p17 = scmp.ne.s32.totalorder 0, %s13
      %s18 = smul.addr %s11, 4
      %s19 = scalar_lea.hbm %s0, %s18
      %s20 = smul.u32 4, %s12
      %s21 = sshll.u32 %s19, 4
      %s22 = int_to_ptr.hbm [resolvable:$true] %s21
      %s23 = sshll.u32 [#allocation2], 4
      %s24 = int_to_ptr.vmem [resolvable:$true] %s23
      %s25 = sshll.u32 %s20, 4
      %29 = dma.hbm_to_vmem [thread:$0]  (%p17), %s22, %s25, %s24, [#allocation3], 64, 64, 4
    $region5: #{tpu_custom_call.1} parent=1 // pred_fallthru
      _
    // Predicated region
    $region6: #{tpu_custom_call.1} parent=1 // pred_check
      _
    $region7: #{tpu_custom_call.1} parent=1 // pred_check_branch
      %31 = sbr.rel (0) target = $region9
    $region8: #{tpu_custom_call.1} parent=1 // pred_region
      %33 = dma.done [#allocation3], 256
    $region9: #{tpu_custom_call.1} parent=1 // pred_fallthru
      _
    %s34 = sadd.s32 0, 0
    %s35 = smul.u32 4, %s34
    %s36 = ssub.s32 1, %s35
    %s37 = smul.u32 4, %s36
    %p38 = scmp.eq.s32.totalorder 0, 0
    // Predicated region
    $region10: #{tpu_custom_call.1} parent=1 // pred_check
      %p39 = pneg %p38
    $region11: #{tpu_custom_call.1} parent=1 // pred_check_branch
      %41 = sbr.rel (%p39) target = $region13
    $region12: #{tpu_custom_call.1} parent=1 // pred_region
      %42 = vst [vmem:[#allocation5] sm:$0xff] 0.0
    $region13: #{tpu_custom_call.1} parent=1 // pred_fallthru
      _
    %v43 = vld [vmem:[#allocation2] sm:$0xff]
    %v44 = vld [vmem:[#allocation2 + $0x8] sm:$0xff]
    %v45 = vlog2.pop %v43
    %v46 = vmul.f32 %v45, 0.6931472
    %v47 = vlog2.pop %v44
    %v48 = vmul.f32 %v47, 0.6931472
    %s49 = sadd.s32 0, 0
    %p50 = scmp.eq.s32.totalorder %s49, 0
    // Predicated region
    $region14: #{tpu_custom_call.1} parent=1 // pred_check
      %p51 = pneg %p50
    $region15: #{tpu_custom_call.1} parent=1 // pred_check_branch
      %53 = sbr.rel (%p51) target = $region17
    $region16: #{tpu_custom_call.1} parent=1 // pred_region
      %v54 = vlaneseq
      %v55 = vshrl.u32 %v54, 7
      %v56 = vadd.s32 %v55, 8
      %vm57 = vcmp.lt.s32.totalorder %v55, 3
      %vm58 = vcmp.lt.s32.totalorder %v56, 3
      %v59 = vld [vmem:[#allocation5] sm:$0xff]
      %v60 = vsel %vm57, %v46, 0.0
      %v61 = vsel %vm58, %v48, 0.0
      %v62 = vadd.f32 %v60, %v61
      %v63 = vadd.f32 %v59, %v62
      %64 = vst [vmem:[#allocation5] sm:$0xff] %v63
    $region17: #{tpu_custom_call.1} parent=1 // pred_fallthru
      _
    %p65 = scmp.ne.s32.totalorder %s49, 0
    // Predicated region
    $region18: #{tpu_custom_call.1} parent=1 // pred_check
      %p66 = pneg %p65
    $region19: #{tpu_custom_call.1} parent=1 // pred_check_branch
      %68 = sbr.rel (%p66) target = $region21
    $region20: #{tpu_custom_call.1} parent=1 // pred_region
      %v69 = vld [vmem:[#allocation5] sm:$0xff]
      %v70 = vadd.f32 %v46, %v48
      %v71 = vadd.f32 %v69, %v70
      %72 = vst [vmem:[#allocation5] sm:$0xff] %v71
    $region21: #{tpu_custom_call.1} parent=1 // pred_fallthru
      _
    // Predicated region
    $region22: #{tpu_custom_call.1} parent=1 // pred_check
      _
    $region23: #{tpu_custom_call.1} parent=1 // pred_check_branch
      %74 = sbr.rel (0) target = $region25
    $region24: #{tpu_custom_call.1} parent=1 // pred_region
      %76 = vsyncadd [#allocation4], 0
      %s78 = sshll.u32 [#allocation5], 4
      %s79 = int_to_ptr.vmem [resolvable:$true] %s78
      %s80 = sshll.u32 %s1, 4
      %s81 = int_to_ptr.hbm [resolvable:$true] %s80
      %83 = dma.vmem_to_hbm [thread:$0]  %s79, 128, %s81, [#allocation4]
    $region25: #{tpu_custom_call.1} parent=1 // pred_fallthru
      _
    // Predicated region
    $region26: #{tpu_custom_call.1} parent=1 // pred_check
      _
    $region27: #{tpu_custom_call.1} parent=1 // pred_check_branch
      %85 = sbr.rel (0) target = $region29
    $region28: #{tpu_custom_call.1} parent=1 // pred_region
      %87 = dma.done [#allocation4], 128
    $region29: #{tpu_custom_call.1} parent=1 // pred_fallthru
      _
    %88 = vsyncpa [#allocation3], 1
    %89 = vsyncpa [#allocation4], 1

</llo_original>
